<compile_context>
chip_gen: v7x
topology: tpu7x:2x2x1
jax: 0.10.0
libtpu: 0.0.40
codegen_flags: <defaults>
</compile_context>

<pallas_src>
import functools

import jax
import jax.numpy as jnp
from jax.experimental import pallas as pl
from jax.experimental.pallas import tpu as pltpu


def _gmf_kernel(uid_ref, iid_ref,            # scalar prefetch (SMEM): [B_pad] int32 each
                u_tbl_ref, i_tbl_ref,        # embedding tables, left in HBM (pl.ANY)
                w_ref, b_ref,                # [1, D] VMEM weight, [1, 1] SMEM bias
                o_ref,                       # [TB, 1] output tile (VMEM)
                u_buf, i_buf,                # [TB, D] VMEM gather buffers (scratch)
                u_sem, i_sem):               # DMA completion semaphores
    tb, _ = u_buf.shape
    base = pl.program_id(0) * tb

    # ---- fused gather: one row DMA per batch element, HBM table -> VMEM buffer ----
    @pl.loop(0, tb)
    def _start(r):
        uidx = uid_ref[base + r]
        iidx = iid_ref[base + r]
        pltpu.make_async_copy(u_tbl_ref.at[pl.ds(uidx, 1)],
                              u_buf.at[pl.ds(r, 1)], u_sem).start()
        pltpu.make_async_copy(i_tbl_ref.at[pl.ds(iidx, 1)],
                              i_buf.at[pl.ds(r, 1)], i_sem).start()

    @pl.loop(0, tb)
    def _wait(r):
        # Source index is irrelevant for wait(); only the per-copy byte count matters.
        pltpu.make_async_copy(u_tbl_ref.at[pl.ds(0, 1)],
                              u_buf.at[pl.ds(r, 1)], u_sem).wait()
        pltpu.make_async_copy(i_tbl_ref.at[pl.ds(0, 1)],
                              i_buf.at[pl.ds(r, 1)], i_sem).wait()

    # ---- compute: (u * i) . w + b  -- pure VPU multiply + XLU lane reduce (no MXU) ----
    prod = u_buf[...] * i_buf[...] * w_ref[...]          # (TB, D) * (1, D) broadcast
    logits = jnp.sum(prod, axis=-1, keepdims=True)       # (TB, 1) reduction over D
    o_ref[...] = (logits + b_ref[0, 0]).astype(o_ref.dtype)


@functools.partial(jax.jit, static_argnames=("block_b",))
def gmf_forward(user_ids, item_ids, user_table, item_table, w, b, *, block_b=512):
    """GMF forward: Linear(user_emb[user_ids] * item_emb[item_ids]) -> [B, 1]."""
    B = user_ids.shape[0]
    D = user_table.shape[1]
    assert block_b % 8 == 0, "batch tile must be a multiple of 8 (sublane)"

    tb = block_b
    n_blocks = pl.cdiv(B, tb)
    b_pad = n_blocks * tb

    # Pad ids with a valid index (0) so every grid step gathers in-bounds rows;
    # padded rows are computed and then sliced off.
    uid = jnp.pad(user_ids.astype(jnp.int32), (0, b_pad - B))
    iid = jnp.pad(item_ids.astype(jnp.int32), (0, b_pad - B))

    out = pl.pallas_call(
        _gmf_kernel,
        out_shape=jax.ShapeDtypeStruct((b_pad, 1), jnp.float32),
        grid_spec=pltpu.PrefetchScalarGridSpec(
            num_scalar_prefetch=2,
            grid=(n_blocks,),
            in_specs=[
                pl.BlockSpec(memory_space=pl.ANY),                     # user table (HBM)
                pl.BlockSpec(memory_space=pl.ANY),                     # item table (HBM)
                pl.BlockSpec((1, D), lambda bi, uids, iids: (0, 0)),   # weight, VMEM resident
                pl.BlockSpec(memory_space=pltpu.MemorySpace.SMEM),     # bias, SMEM scalar
            ],
            out_specs=pl.BlockSpec((tb, 1), lambda bi, uids, iids: (bi, 0)),
            scratch_shapes=[
                pltpu.VMEM((tb, D), user_table.dtype),
                pltpu.VMEM((tb, D), item_table.dtype),
                pltpu.SemaphoreType.DMA(()),
                pltpu.SemaphoreType.DMA(()),
            ],
        ),
        compiler_params=pltpu.CompilerParams(
            dimension_semantics=("parallel",),
        ),
    )(uid, iid, user_table, item_table, w, b)

    return out[:B]


def init_gmf_params(key, n_users, n_items, n_components):
    """Deterministic parameter init mirroring GMF.__init__ shapes."""
    k_u, k_i, k_w, k_b = jax.random.split(key, 4)
    # Embedding.weight.data.normal_(0, 0.1)
    user_table = 0.1 * jax.random.normal(k_u, (n_users, n_components), jnp.float32)
    item_table = 0.1 * jax.random.normal(k_i, (n_items, n_components), jnp.float32)
    # nn.Linear(n_components, 1): weight shape (1, D), uniform(-1/sqrt(D), 1/sqrt(D))
    bound = 1.0 / (n_components ** 0.5)
    w = jax.random.uniform(k_w, (1, n_components), jnp.float32, -bound, bound)
    b = jax.random.uniform(k_b, (1, 1), jnp.float32, -bound, bound)
    return user_table, item_table, w, b


if __name__ == "__main__":
    n_users, n_items, n_components = 640, 800, 32
    batch = 1000   # deliberately not a multiple of the batch tile (exercises padding)

    key = jax.random.PRNGKey(0)
    k_params, k_uid, k_iid = jax.random.split(key, 3)

    user_table, item_table, w, b = init_gmf_params(
        k_params, n_users, n_items, n_components)

    user_ids = jax.random.randint(k_uid, (batch,), 0, n_users, jnp.int32)
    item_ids = jax.random.randint(k_iid, (batch,), 0, n_items, jnp.int32)

    out = gmf_forward(user_ids, item_ids, user_table, item_table, w, b, block_b=256)
    out = jax.block_until_ready(out)

    # Pure-JAX reference of the full fused path (gather + mul + linear).
    ref = (jnp.take(user_table, user_ids, axis=0)
           * jnp.take(item_table, item_ids, axis=0)) @ w.T + b
    assert out.shape == (batch, 1)
    assert jnp.allclose(out, ref, atol=1e-5, rtol=1e-5), \
        float(jnp.max(jnp.abs(out - ref)))

    print("KERNEL_OK")
</pallas_src>

<mosaic_0001>
module attributes {stable_mosaic.version = 11 : i64} {
  func.func @_gmf_kernel(%arg0: i32, %arg1: memref<1024xi32, #tpu.memory_space<smem>>, %arg2: memref<1024xi32, #tpu.memory_space<smem>>, %arg3: memref<640x32xf32, #tpu.memory_space<any>>, %arg4: memref<800x32xf32, #tpu.memory_space<any>>, %arg5: memref<1x32xf32, #tpu.memory_space<vmem>>, %arg6: memref<1x1xf32, #tpu.memory_space<smem>>, %arg7: memref<256x1xf32, #tpu.memory_space<vmem>>, %arg8: memref<256x32xf32, #tpu.memory_space<vmem>>, %arg9: memref<256x32xf32, #tpu.memory_space<vmem>>, %arg10: memref<!tpu.dma_semaphore, #tpu.memory_space<semaphore_mem>>, %arg11: memref<!tpu.dma_semaphore, #tpu.memory_space<semaphore_mem>>) attributes {dimension_semantics = [#tpu.dimension_semantics<parallel>], iteration_bounds = array<i64: 4>, scalar_prefetch = 2 : i64, scratch_operands = 4 : i64, tpu.core_type = #tpu.core_type<tc>, window_params = [{}, {}, {pipeline_mode = #tpu.pipeline_mode<synchronous>, transform_indices = @transform_2, window_bounds = array<i64: 1, 32>}, {transform_indices = @transform_3, window_bounds = array<i64: 1, 1>}, {transform_indices = @transform_4, window_bounds = array<i64: 256, 1>}]} {
    %c256_i32 = arith.constant 256 : i32
    %0 = arith.muli %arg0, %c256_i32 : i32
    %c0_i32 = arith.constant 0 : i32
    %c256_i32_0 = arith.constant 256 : i32
    %1 = arith.addi %c0_i32, %c256_i32_0 : i32
    %c1_i32 = arith.constant 1 : i32
    scf.for %arg12 = %c0_i32 to %1 step %c1_i32  : i32 {
      %c1_i32_15 = arith.constant 1 : i32
      %15 = arith.muli %arg12, %c1_i32_15 : i32
      %c0_i32_16 = arith.constant 0 : i32
      %16 = arith.addi %c0_i32_16, %15 : i32
      %17 = arith.addi %0, %16 : i32
      %18 = arith.index_cast %17 : i32 to index
      %19 = memref.load %arg1[%18] : memref<1024xi32, #tpu.memory_space<smem>>
      %20 = arith.addi %0, %16 : i32
      %21 = arith.index_cast %20 : i32 to index
      %22 = memref.load %arg2[%21] : memref<1024xi32, #tpu.memory_space<smem>>
      %c0_i32_17 = arith.constant 0 : i32
      %23 = tpu.memref_slice %arg3[%19, %c0_i32_17] : memref<640x32xf32, #tpu.memory_space<any>> -> memref<1x32xf32, #tpu.memory_space<any>>
      %c0_i32_18 = arith.constant 0 : i32
      %24 = tpu.memref_slice %arg8[%16, %c0_i32_18] : memref<256x32xf32, #tpu.memory_space<vmem>> -> memref<1x32xf32, #tpu.memory_space<vmem>>
      tpu.enqueue_dma source(%23 : memref<1x32xf32, #tpu.memory_space<any>>) target(%24 : memref<1x32xf32, #tpu.memory_space<vmem>>) target_semaphore(%arg10 : memref<!tpu.dma_semaphore, #tpu.memory_space<semaphore_mem>>)
      %c0_i32_19 = arith.constant 0 : i32
      %25 = tpu.memref_slice %arg4[%22, %c0_i32_19] : memref<800x32xf32, #tpu.memory_space<any>> -> memref<1x32xf32, #tpu.memory_space<any>>
      %c0_i32_20 = arith.constant 0 : i32
      %26 = tpu.memref_slice %arg9[%16, %c0_i32_20] : memref<256x32xf32, #tpu.memory_space<vmem>> -> memref<1x32xf32, #tpu.memory_space<vmem>>
      tpu.enqueue_dma source(%25 : memref<1x32xf32, #tpu.memory_space<any>>) target(%26 : memref<1x32xf32, #tpu.memory_space<vmem>>) target_semaphore(%arg11 : memref<!tpu.dma_semaphore, #tpu.memory_space<semaphore_mem>>)
    }
    %c256_i32_1 = arith.constant 256 : i32
    %c0_i32_2 = arith.constant 0 : i32
    %c256_i32_3 = arith.constant 256 : i32
    %2 = arith.addi %c0_i32_2, %c256_i32_3 : i32
    %c1_i32_4 = arith.constant 1 : i32
    scf.for %arg12 = %c0_i32_2 to %2 step %c1_i32_4  : i32 {
      %c1_i32_15 = arith.constant 1 : i32
      %15 = arith.muli %arg12, %c1_i32_15 : i32
      %c0_i32_16 = arith.constant 0 : i32
      %16 = arith.addi %c0_i32_16, %15 : i32
      %c0_i32_17 = arith.constant 0 : i32
      %c0_i32_18 = arith.constant 0 : i32
      %17 = tpu.memref_slice %arg3[%c0_i32_17, %c0_i32_18] : memref<640x32xf32, #tpu.memory_space<any>> -> memref<1x32xf32, #tpu.memory_space<any>>
      %c0_i32_19 = arith.constant 0 : i32
      %18 = tpu.memref_slice %arg8[%16, %c0_i32_19] : memref<256x32xf32, #tpu.memory_space<vmem>> -> memref<1x32xf32, #tpu.memory_space<vmem>>
      tpu.wait_dma2 semaphore(%arg10 : memref<!tpu.dma_semaphore, #tpu.memory_space<semaphore_mem>>) src(%17 : memref<1x32xf32, #tpu.memory_space<any>>) dst(%18 : memref<1x32xf32, #tpu.memory_space<vmem>>)
      %c0_i32_20 = arith.constant 0 : i32
      %c0_i32_21 = arith.constant 0 : i32
      %19 = tpu.memref_slice %arg4[%c0_i32_20, %c0_i32_21] : memref<800x32xf32, #tpu.memory_space<any>> -> memref<1x32xf32, #tpu.memory_space<any>>
      %c0_i32_22 = arith.constant 0 : i32
      %20 = tpu.memref_slice %arg9[%16, %c0_i32_22] : memref<256x32xf32, #tpu.memory_space<vmem>> -> memref<1x32xf32, #tpu.memory_space<vmem>>
      tpu.wait_dma2 semaphore(%arg11 : memref<!tpu.dma_semaphore, #tpu.memory_space<semaphore_mem>>) src(%19 : memref<1x32xf32, #tpu.memory_space<any>>) dst(%20 : memref<1x32xf32, #tpu.memory_space<vmem>>)
    }
    %c256_i32_5 = arith.constant 256 : i32
    %c0 = arith.constant 0 : index
    %c0_6 = arith.constant 0 : index
    %3 = vector.load %arg8[%c0, %c0_6] : memref<256x32xf32, #tpu.memory_space<vmem>>, vector<256x32xf32>
    %c0_7 = arith.constant 0 : index
    %c0_8 = arith.constant 0 : index
    %4 = vector.load %arg9[%c0_7, %c0_8] : memref<256x32xf32, #tpu.memory_space<vmem>>, vector<256x32xf32>
    %5 = arith.mulf %3, %4 : vector<256x32xf32>
    %c0_9 = arith.constant 0 : index
    %c0_10 = arith.constant 0 : index
    %6 = vector.load %arg5[%c0_9, %c0_10] : memref<1x32xf32, #tpu.memory_space<vmem>>, vector<1x32xf32>
    %7 = vector.broadcast %6 : vector<1x32xf32> to vector<256x32xf32>
    %8 = arith.mulf %5, %7 : vector<256x32xf32>
    %cst = arith.constant dense<0.000000e+00> : vector<256xf32>
    %9 = vector.multi_reduction <add>, %8, %cst [1] : vector<256x32xf32> to vector<256xf32>
    %10 = vector.shape_cast %9 : vector<256xf32> to vector<256x1xf32>
    %c0_11 = arith.constant 0 : index
    %c0_12 = arith.constant 0 : index
    %11 = memref.load %arg6[%c0_11, %c0_12] : memref<1x1xf32, #tpu.memory_space<smem>>
    %12 = vector.broadcast %11 : f32 to vector<256x1xf32>
    %13 = arith.addf %10, %12 : vector<256x1xf32>
    %c0_13 = arith.constant 0 : index
    %c0_14 = arith.constant 0 : index
    %14 = vector.load %arg7[%c0_13, %c0_14] : memref<256x1xf32, #tpu.memory_space<vmem>>, vector<256x1xf32>
    tpu.vector_store %arg7[%c0_13, %c0_14], %13 {strides = array<i32>} : memref<256x1xf32, #tpu.memory_space<vmem>>, vector<256x1xf32>,
    return
  }
  func.func @transform_2(%arg0: i32, %arg1: memref<1024xi32, #tpu.memory_space<smem>>, %arg2: memref<1024xi32, #tpu.memory_space<smem>>) -> (i32, i32) {
    %c0_i32 = arith.constant 0 : i32
    %c0_i32_0 = arith.constant 0 : i32
    %c0_i32_1 = arith.constant 0 : i32
    return %c0_i32, %c0_i32_0 : i32, i32
  }
  func.func @transform_3(%arg0: i32, %arg1: memref<1024xi32, #tpu.memory_space<smem>>, %arg2: memref<1024xi32, #tpu.memory_space<smem>>) -> (i32, i32) {
    %c0_i32 = arith.constant 0 : i32
    %c0_i32_0 = arith.constant 0 : i32
    %c0_i32_1 = arith.constant 0 : i32
    return %c0_i32, %c0_i32_0 : i32, i32
  }
  func.func @transform_4(%arg0: i32, %arg1: memref<1024xi32, #tpu.memory_space<smem>>, %arg2: memref<1024xi32, #tpu.memory_space<smem>>) -> (i32, i32) {
    %c0_i32 = arith.constant 0 : i32
    %c0_i32_0 = arith.constant 0 : i32
    return %arg0, %c0_i32 : i32, i32
  }
}

</mosaic_0001>

<llo_original>
// kernel: gmf_forward.1
$region0: #{gmf_forward.1}
  #allocation0 [shape = 'u32[]', space=smem, size = 0x4, offset = 0x4, fixed_abs, tag = 'smem constant byte address 0x4 - core index']
  #allocation1 [shape = 'u32[144,128]{1,0:T(1,128)}', space=vmem, size = 0x12000, scoped, tag = 'internal scratch']
  #allocation2 [shape = 'f32[256,32]{1,0:T(8,128)}', space=vmem, size = 0x20000, scoped, tag = 'scratch operand']
  #allocation3 [shape = 'f32[256,32]{1,0:T(8,128)}', space=vmem, size = 0x20000, scoped, tag = 'scratch operand']
  #allocation4 [shape = 's32[1]{0}', space=sflag, size = 0x4, scoped, tag = 'scratch operand']
  #allocation5 [shape = 's32[1]{0}', space=sflag, size = 0x4, scoped, tag = 'scratch operand']
  #allocation6 [shape = 's32[1]{0}', space=sflag, size = 0x4, scoped, tag = 'scoped memory for gmf_forward.1']
  #allocation7 [shape = 'u8[4096]{0}', space=smem, size = 0x1000, scoped, tag = 'prefetched SMEM operand 0']
  #allocation8 [shape = 'u8[4096]{0}', space=smem, size = 0x1000, scoped, tag = 'prefetched SMEM operand 1']
  #allocation9 [shape = 'f32[1,1]{1,0:T(1,128)S(6)}', space=smem, size = 0x200, scoped, tag = 'scoped memory for gmf_forward.1']
  #allocation10 [shape = 's32[]', space=sflag, size = 0x4, offset = 0, fixed_abs, tag = 'sflag constant byte address 0x0 - dummy sync flag']
  #allocation11 [shape = 's32[]', space=sflag, size = 0x4, offset = 0, fixed_abs, tag = 'sflag constant byte address 0x0 - dummy sync flag']
  %s0 = inlined_call_operand.vmem [shape: s32[1024], index: 0, kind: input, shape index: {}]
  %s1 = inlined_call_operand.vmem [shape: s32[1024], index: 1, kind: input, shape index: {}]
  %s2 = inlined_call_operand.vmem [shape: f32[640,32], index: 2, kind: input, shape index: {}]
  %s3 = inlined_call_operand.vmem [shape: f32[800,32], index: 3, kind: input, shape index: {}]
  %s4 = inlined_call_operand.vmem [shape: f32[1,32], index: 4, kind: input, shape index: {}]
  %s5 = inlined_call_operand.<no memory space> [shape: f32[1,1], index: 5, kind: input, shape index: {}]
  %s6 = inlined_call_operand.vmem [shape: f32[1024,1], index: 6, kind: output, shape index: {}]
  %s7 = sld [smem:[#allocation0]]
  $region115: #{gmf_forward.1} parent=0
    _
  %s9 = ssub.s32 1, %s7
  %s10 = scalar_select 0, %s9, %s7
  %s11 = sshll.u32 %s0, 4
  %s12 = int_to_ptr.vmem [resolvable:$true] %s11
  %14 = dma.vmem_to_smem %s12, 128, [#allocation7], [#allocation6]
  %s15 = sshll.u32 %s1, 4
  %s16 = int_to_ptr.vmem [resolvable:$true] %s15
  %18 = dma.vmem_to_smem %s16, 128, [#allocation8], [#allocation6]
  %19 = sst [smem:[#allocation9]] %s5
  %20 = dma.done [#allocation6], 256
  %21 = sfence
  loop: start=0, step=1, limit=6
  $region2: #{gmf_forward.1} parent=0 // loop_pre_header
    _
  $region3: #{gmf_forward.1} parent=0 // loop_header
    %s23 = sphi 0, %s27
    %p24 = scmp.ge.s32.totalorder %s23, 6
    %s31 = sphi 0, %s31
    %s33 = sphi 0, %s31
    %s34 = sphi 0, %s33
    %s48 = sphi 0, %s34
    %s52 = sphi 0, %s52
    %s54 = sphi 0, %s52
    %s55 = sphi 0, %s54
    %s69 = sphi 0, %s55
    %s75 = sphi 0, %s77
    %s78 = sphi 0, %s75
    %s79 = sphi 0, %s78
    %s95 = sphi 0, %s79
  $region4: #{gmf_forward.1} parent=0 // loop_header_branch
    %26 = sbr.rel (%p24) target = $region8
  $region5: #{gmf_forward.1} parent=0 // loop_body
    %s28 = ssub.s32 %s23, 1
    %s29 = ssub.s32 %s23, 2
    %s30 = sadd.s32 %s23, 1
    %s32 = sadd.s32 %s31, 1
    %p35 = scmp.eq.s32.totalorder %s23, 3
    %p36 = scmp.ne.s32.totalorder %s31, %s33
    %p37 = scmp.eq.s32.totalorder %s23, 0
    %p38 = por %p36, %p37
    %p39 = scmp.ne.s32.totalorder %s31, %s33
    %p40 = scmp.eq.s32.totalorder %s28, 3
    %p41 = por %p39, %p40
    %p42 = scmp.ne.s32.totalorder %s33, %s34
    %p43 = scmp.eq.s32.totalorder %s28, 0
    %p44 = por %p42, %p43
    %p45 = scmp.ne.s32.totalorder %s33, %s34
    %p46 = scmp.eq.s32.totalorder %s29, 3
    %p47 = por %p45, %p46
    %p49 = scmp.ne.s32.totalorder %s34, %s48
    %p50 = scmp.eq.s32.totalorder %s29, 0
    %p51 = por %p49, %p50
    %s53 = sadd.s32 %s52, 1
    %p56 = scmp.eq.s32.totalorder %s23, 3
    %p57 = scmp.ne.s32.totalorder %s52, %s54
    %p58 = scmp.eq.s32.totalorder %s23, 0
    %p59 = por %p57, %p58
    %p60 = scmp.ne.s32.totalorder %s52, %s54
    %p61 = scmp.eq.s32.totalorder %s28, 3
    %p62 = por %p60, %p61
    %p63 = scmp.ne.s32.totalorder %s54, %s55
    %p64 = scmp.eq.s32.totalorder %s28, 0
    %p65 = por %p63, %p64
    %p66 = scmp.ne.s32.totalorder %s54, %s55
    %p67 = scmp.eq.s32.totalorder %s29, 3
    %p68 = por %p66, %p67
    %p70 = scmp.ne.s32.totalorder %s55, %s69
    %p71 = scmp.eq.s32.totalorder %s29, 0
    %p72 = por %p70, %p71
    %s73 = ssub.s32 %s23, %s30
    %p74 = scmp.eq.s32.totalorder %s73, 0
    %s76 = sadd.s32 %s75, 1
    %s77 = scalar_select %p74, %s75, %s76
    %p80 = pneg %p74
    %p81 = scmp.eq.s32.totalorder %s23, 3
    %p82 = por %p80, %p81
    %p83 = scmp.ne.s32.totalorder %s75, %s78
    %p84 = scmp.eq.s32.totalorder %s23, 0
    %p85 = por %p83, %p84
    %p86 = scmp.ne.s32.totalorder %s75, %s78
    %p87 = scmp.eq.s32.totalorder %s28, 3
    %p88 = por %p86, %p87
    %p89 = scmp.ne.s32.totalorder %s78, %s79
    %p90 = scmp.eq.s32.totalorder %s28, 0
    %p91 = por %p89, %p90
    %p92 = scmp.ne.s32.totalorder %s78, %s79
    %p93 = scmp.eq.s32.totalorder %s29, 3
    %p94 = por %p92, %p93
    %p96 = scmp.ne.s32.totalorder %s79, %s95
    %p97 = scmp.eq.s32.totalorder %s29, 0
    %p98 = por %p96, %p97
    %p99 = scmp.le.s32.totalorder 1, %s23
    %p100 = scmp.lt.s32.totalorder %s23, 5
    %p101 = pnand %p99, %p100
    %p102 = pneg %p101
    // Predicated region
    $region9: #{gmf_forward.1} parent=5 // pred_check
      _
    $region10: #{gmf_forward.1} parent=5 // pred_check_branch
      %104 = sbr.rel (%p101) target = $region12
    $region11: #{gmf_forward.1} parent=5 // pred_region
      %s105 = ssub.s32 %s23, 1
      // Predicated region
      $region13: #{gmf_forward.1} parent=11 // pred_check
        %p106 = pneg %p44
      $region14: #{gmf_forward.1} parent=11 // pred_check_branch
        %108 = sbr.rel (%p106) target = $region16
      $region15: #{gmf_forward.1} parent=11 // pred_region
        _
      $region16: #{gmf_forward.1} parent=11 // pred_fallthru
        _
      // Predicated region
      $region17: #{gmf_forward.1} parent=11 // pred_check
        %p109 = pneg %p65
      $region18: #{gmf_forward.1} parent=11 // pred_check_branch
        %111 = sbr.rel (%p109) target = $region20
      $region19: #{gmf_forward.1} parent=11 // pred_region
        _
      $region20: #{gmf_forward.1} parent=11 // pred_fallthru
        _
    $region12: #{gmf_forward.1} parent=5 // pred_fallthru
      _
    %p112 = scmp.lt.s32.totalorder %s23, 4
    // Predicated region
    $region21: #{gmf_forward.1} parent=5 // pred_check
      %p113 = pneg %p112
    $region22: #{gmf_forward.1} parent=5 // pred_check_branch
      %115 = sbr.rel (%p113) target = $region24
    $region23: #{gmf_forward.1} parent=5 // pred_region
      _
    $region24: #{gmf_forward.1} parent=5 // pred_fallthru
      _
    %p116 = scmp.le.s32.totalorder 1, %s23
    %p117 = scmp.lt.s32.totalorder %s23, 5
    %p118 = pnand %p116, %p117
    %p119 = pneg %p118
    // Predicated region
    $region25: #{gmf_forward.1} parent=5 // pred_check
      _
    $region26: #{gmf_forward.1} parent=5 // pred_check_branch
      %121 = sbr.rel (%p118) target = $region28
    $region27: #{gmf_forward.1} parent=5 // pred_region
      %s122 = ssub.s32 %s23, 1
      %p123 = pneg %p44
      %p124 = pneg %p41
      %p125 = pneg %p65
      %p126 = pneg %p62
      %p127 = pneg %p91
      %p128 = pneg %p88
      %s129 = smul.u32 32, %s28
      %p130 = scmp.lt.s32.totalorder %s129, 127
      %s131 = scalar_select %p130, %s129, 127
      %s132 = smul.addr %s131, 8
      %s133 = scalar_lea.vmem %s6, %s132
      %s134 = smul.u32 32, %s28
      %p135 = scmp.lt.s32.totalorder %s134, 127
      %s136 = scalar_select %p135, %s134, 127
      %s137 = smul.addr %s136, 8
      %s138 = scalar_lea.vmem %s6, %s137
      %s139 = smul.u32 32, %s28
      %s140 = smul.u32 %s28, 256
      loop: start=0, step=1, limit=256
      $region29: #{gmf_forward.1} parent=27 // loop_pre_header
        _
      $region30: #{gmf_forward.1} parent=27 // loop_header
        %s142 = sphi 0, %s146
        %p143 = scmp.ge.s32.totalorder %s142, 256
      $region31: #{gmf_forward.1} parent=27 // loop_header_branch
        %145 = sbr.rel (%p143) target = $region35
      $region32: #{gmf_forward.1} parent=27 // loop_body
        %s147 = sadd.s32 %s140, %s142
        %s148 = sld [smem:[#allocation7 + %s147]]
        %s149 = sld [smem:[#allocation8 + %s147]]
        %s150 = scalar_lea.vmem %s2, %s148
        %s151 = scalar_lea.vmem [#allocation2], %s142
        %p153 = scmp.lt.u32.totalorder 1, 8
        %p154 = pneg %p153
        // Predicated region
        $region36: #{gmf_forward.1} parent=32 // pred_check
          _
        $region37: #{gmf_forward.1} parent=32 // pred_check_branch
          %156 = sbr.rel (%p153) target = $region39
        $region38: #{gmf_forward.1} parent=32 // pred_region
          %s171 = sand.u32 1, 7
          %p172 = scmp.eq.s32.totalorder %s171, 0
          %p173 = pneg %p172
          // Predicated region
          $region51: #{gmf_forward.1} parent=38 // pred_check
            _
          $region52: #{gmf_forward.1} parent=38 // pred_check_branch
            %175 = sbr.rel (%p172) target = $region54
          $region53: #{gmf_forward.1} parent=38 // pred_region
            %s176 = sand.u32 1, 7
            %s177 = ssub.s32 1, %s176
            %s178 = scalar_lea.vmem %s150, %s177
            %s179 = ssub.s32 1, %s176
            %s180 = scalar_lea.vmem %s151, %s179 [#allocation2]
            %s181 = sshllo.u32 0, %s176
            loop: start=0, step=1, limit=1
            $region55: #{gmf_forward.1} parent=53 // loop_pre_header
              _
            $region56: #{gmf_forward.1} parent=53 // loop_header
              %s183 = sphi 0, %s187
              %p184 = scmp.ge.s32.totalorder %s183, 1
              %s188 = sphi %s178, %s178
              %s189 = sphi %s180, %s180
            $region57: #{gmf_forward.1} parent=53 // loop_header_branch
              %186 = sbr.rel (%p184) target = $region61
            $region58: #{gmf_forward.1} parent=53 // loop_body
              %v190 = vld [vmem:[%s188] sm:%s181]
              %191 = vst [vmem:[%s189] sm:%s181] %v190
            $region59: #{gmf_forward.1} parent=53 // loop_footer
              %s187 = sadd.s32 1, %s183
            $region60: #{gmf_forward.1} parent=53 // loop_footer_branch
              %182 = sbr.rel target = $region56
            $region61: #{gmf_forward.1} parent=53 // loop_exit
              _
          $region54: #{gmf_forward.1} parent=38 // pred_fallthru
            _
        $region39: #{gmf_forward.1} parent=32 // pred_fallthru
          _
        // Predicated region
        $region40: #{gmf_forward.1} parent=32 // pred_check
          %p157 = pneg %p153
        $region41: #{gmf_forward.1} parent=32 // pred_check_branch
          %159 = sbr.rel (%p157) target = $region43
        $region42: #{gmf_forward.1} parent=32 // pred_region
          %s160 = sshllo.u32 0, 1
          loop: start=0, step=1, limit=1
          $region44: #{gmf_forward.1} parent=42 // loop_pre_header
            _
          $region45: #{gmf_forward.1} parent=42 // loop_header
            %s162 = sphi 0, %s166
            %p163 = scmp.ge.s32.totalorder %s162, 1
            %s167 = sphi %s150, %s150
            %s168 = sphi %s151, %s151
          $region46: #{gmf_forward.1} parent=42 // loop_header_branch
            %165 = sbr.rel (%p163) target = $region50
          $region47: #{gmf_forward.1} parent=42 // loop_body
            %v169 = vld [vmem:[%s167] sm:%s160]
            %170 = vst [vmem:[%s168] sm:%s160] %v169
          $region48: #{gmf_forward.1} parent=42 // loop_footer
            %s166 = sadd.s32 1, %s162
          $region49: #{gmf_forward.1} parent=42 // loop_footer_branch
            %161 = sbr.rel target = $region45
          $region50: #{gmf_forward.1} parent=42 // loop_exit
            _
        $region43: #{gmf_forward.1} parent=32 // pred_fallthru
          _
        // Predicated region
        $region62: #{gmf_forward.1} parent=32 // pred_check
          _
        $region63: #{gmf_forward.1} parent=32 // pred_check_branch
          %194 = sbr.rel (0) target = $region65
        $region64: #{gmf_forward.1} parent=32 // pred_region
          %195 = vsyncadd [#allocation4], 16
        $region65: #{gmf_forward.1} parent=32 // pred_fallthru
          _
        %s196 = scalar_lea.vmem %s3, %s149
        %s197 = scalar_lea.vmem [#allocation3], %s142
        %p199 = scmp.lt.u32.totalorder 1, 8
        %p200 = pneg %p199
        // Predicated region
        $region66: #{gmf_forward.1} parent=32 // pred_check
          _
        $region67: #{gmf_forward.1} parent=32 // pred_check_branch
          %202 = sbr.rel (%p199) target = $region69
        $region68: #{gmf_forward.1} parent=32 // pred_region
          %s217 = sand.u32 1, 7
          %p218 = scmp.eq.s32.totalorder %s217, 0
          %p219 = pneg %p218
          // Predicated region
          $region81: #{gmf_forward.1} parent=68 // pred_check
            _
          $region82: #{gmf_forward.1} parent=68 // pred_check_branch
            %221 = sbr.rel (%p218) target = $region84
          $region83: #{gmf_forward.1} parent=68 // pred_region
            %s222 = sand.u32 1, 7
            %s223 = ssub.s32 1, %s222
            %s224 = scalar_lea.vmem %s196, %s223
            %s225 = ssub.s32 1, %s222
            %s226 = scalar_lea.vmem %s197, %s225 [#allocation3]
            %s227 = sshllo.u32 0, %s222
            loop: start=0, step=1, limit=1
            $region85: #{gmf_forward.1} parent=83 // loop_pre_header
              _
            $region86: #{gmf_forward.1} parent=83 // loop_header
              %s229 = sphi 0, %s233
              %p230 = scmp.ge.s32.totalorder %s229, 1
              %s234 = sphi %s224, %s224
              %s235 = sphi %s226, %s226
            $region87: #{gmf_forward.1} parent=83 // loop_header_branch
              %232 = sbr.rel (%p230) target = $region91
            $region88: #{gmf_forward.1} parent=83 // loop_body
              %v236 = vld [vmem:[%s234] sm:%s227]
              %237 = vst [vmem:[%s235] sm:%s227] %v236
            $region89: #{gmf_forward.1} parent=83 // loop_footer
              %s233 = sadd.s32 1, %s229
            $region90: #{gmf_forward.1} parent=83 // loop_footer_branch
              %228 = sbr.rel target = $region86
            $region91: #{gmf_forward.1} parent=83 // loop_exit
              _
          $region84: #{gmf_forward.1} parent=68 // pred_fallthru
            _
        $region69: #{gmf_forward.1} parent=32 // pred_fallthru
          _
        // Predicated region
        $region70: #{gmf_forward.1} parent=32 // pred_check
          %p203 = pneg %p199
        $region71: #{gmf_forward.1} parent=32 // pred_check_branch
          %205 = sbr.rel (%p203) target = $region73
        $region72: #{gmf_forward.1} parent=32 // pred_region
          %s206 = sshllo.u32 0, 1
          loop: start=0, step=1, limit=1
          $region74: #{gmf_forward.1} parent=72 // loop_pre_header
            _
          $region75: #{gmf_forward.1} parent=72 // loop_header
            %s208 = sphi 0, %s212
            %p209 = scmp.ge.s32.totalorder %s208, 1
            %s213 = sphi %s196, %s196
            %s214 = sphi %s197, %s197
          $region76: #{gmf_forward.1} parent=72 // loop_header_branch
            %211 = sbr.rel (%p209) target = $region80
          $region77: #{gmf_forward.1} parent=72 // loop_body
            %v215 = vld [vmem:[%s213] sm:%s206]
            %216 = vst [vmem:[%s214] sm:%s206] %v215
          $region78: #{gmf_forward.1} parent=72 // loop_footer
            %s212 = sadd.s32 1, %s208
          $region79: #{gmf_forward.1} parent=72 // loop_footer_branch
            %207 = sbr.rel target = $region75
          $region80: #{gmf_forward.1} parent=72 // loop_exit
            _
        $region73: #{gmf_forward.1} parent=32 // pred_fallthru
          _
        // Predicated region
        $region92: #{gmf_forward.1} parent=32 // pred_check
          _
        $region93: #{gmf_forward.1} parent=32 // pred_check_branch
          %240 = sbr.rel (0) target = $region95
        $region94: #{gmf_forward.1} parent=32 // pred_region
          %241 = vsyncadd [#allocation5], 16
        $region95: #{gmf_forward.1} parent=32 // pred_fallthru
          _
      $region33: #{gmf_forward.1} parent=27 // loop_footer
        %s146 = sadd.s32 1, %s142
      $region34: #{gmf_forward.1} parent=27 // loop_footer_branch
        %141 = sbr.rel target = $region30
      $region35: #{gmf_forward.1} parent=27 // loop_exit
        _
      loop: start=0, step=1, limit=256
      $region96: #{gmf_forward.1} parent=27 // loop_pre_header
        _
      $region97: #{gmf_forward.1} parent=27 // loop_header
        %s243 = sphi 0, %s247
        %p244 = scmp.ge.s32.totalorder %s243, 256
      $region98: #{gmf_forward.1} parent=27 // loop_header_branch
        %246 = sbr.rel (%p244) target = $region102
      $region99: #{gmf_forward.1} parent=27 // loop_body
        %s248 = smul.u32 1, 1
        %s249 = sshll.u32 %s248, 4
        %250 = dma.done [#allocation4], %s249
        %s251 = sshll.u32 %s248, 4
        %252 = dma.done [#allocation5], %s251
      $region100: #{gmf_forward.1} parent=27 // loop_footer
        %s247 = sadd.s32 1, %s243
      $region101: #{gmf_forward.1} parent=27 // loop_footer_branch
        %242 = sbr.rel target = $region97
      $region102: #{gmf_forward.1} parent=27 // loop_exit
        _
      %v253 = vld [vmem:[#allocation2] sm:$0xff]
      %v254 = vld [vmem:[#allocation2 + $0x8] sm:$0xff]
      %v255 = vld [vmem:[#allocation2 + $0x10] sm:$0xff]
      %v256 = vld [vmem:[#allocation2 + $0x18] sm:$0xff]
      %v257 = vld [vmem:[#allocation2 + $0x20] sm:$0xff]
      %v258 = vld [vmem:[#allocation2 + $0x28] sm:$0xff]
      %v259 = vld [vmem:[#allocation2 + $0x30] sm:$0xff]
      %v260 = vld [vmem:[#allocation2 + $0x38] sm:$0xff]
      %v261 = vld [vmem:[#allocation2 + $0x40] sm:$0xff]
      %v262 = vld [vmem:[#allocation2 + $0x48] sm:$0xff]
      %v263 = vld [vmem:[#allocation2 + $0x50] sm:$0xff]
      %v264 = vld [vmem:[#allocation2 + $0x58] sm:$0xff]
      %v265 = vld [vmem:[#allocation2 + $0x60] sm:$0xff]
      %v266 = vld [vmem:[#allocation2 + $0x68] sm:$0xff]
      %v267 = vld [vmem:[#allocation2 + $0x70] sm:$0xff]
      %v268 = vld [vmem:[#allocation2 + $0x78] sm:$0xff]
      %v269 = vld [vmem:[#allocation2 + $0x80] sm:$0xff]
      %v270 = vld [vmem:[#allocation2 + $0x88] sm:$0xff]
      %v271 = vld [vmem:[#allocation2 + $0x90] sm:$0xff]
      %v272 = vld [vmem:[#allocation2 + $0x98] sm:$0xff]
      %v273 = vld [vmem:[#allocation2 + $0xa0] sm:$0xff]
      %v274 = vld [vmem:[#allocation2 + $0xa8] sm:$0xff]
      %v275 = vld [vmem:[#allocation2 + $0xb0] sm:$0xff]
      %v276 = vld [vmem:[#allocation2 + $0xb8] sm:$0xff]
      %v277 = vld [vmem:[#allocation2 + $0xc0] sm:$0xff]
      %v278 = vld [vmem:[#allocation2 + $0xc8] sm:$0xff]
      %v279 = vld [vmem:[#allocation2 + $0xd0] sm:$0xff]
      %v280 = vld [vmem:[#allocation2 + $0xd8] sm:$0xff]
      %v281 = vld [vmem:[#allocation2 + $0xe0] sm:$0xff]
      %v282 = vld [vmem:[#allocation2 + $0xe8] sm:$0xff]
      %v283 = vld [vmem:[#allocation2 + $0xf0] sm:$0xff]
      %v284 = vld [vmem:[#allocation2 + $0xf8] sm:$0xff]
      %v285 = vld [vmem:[#allocation3] sm:$0xff]
      %v286 = vld [vmem:[#allocation3 + $0x8] sm:$0xff]
      %v287 = vld [vmem:[#allocation3 + $0x10] sm:$0xff]
      %v288 = vld [vmem:[#allocation3 + $0x18] sm:$0xff]
      %v289 = vld [vmem:[#allocation3 + $0x20] sm:$0xff]
      %v290 = vld [vmem:[#allocation3 + $0x28] sm:$0xff]
      %v291 = vld [vmem:[#allocation3 + $0x30] sm:$0xff]
      %v292 = vld [vmem:[#allocation3 + $0x38] sm:$0xff]
      %v293 = vld [vmem:[#allocation3 + $0x40] sm:$0xff]
      %v294 = vld [vmem:[#allocation3 + $0x48] sm:$0xff]
      %v295 = vld [vmem:[#allocation3 + $0x50] sm:$0xff]
      %v296 = vld [vmem:[#allocation3 + $0x58] sm:$0xff]
      %v297 = vld [vmem:[#allocation3 + $0x60] sm:$0xff]
      %v298 = vld [vmem:[#allocation3 + $0x68] sm:$0xff]
      %v299 = vld [vmem:[#allocation3 + $0x70] sm:$0xff]
      %v300 = vld [vmem:[#allocation3 + $0x78] sm:$0xff]
      %v301 = vld [vmem:[#allocation3 + $0x80] sm:$0xff]
      %v302 = vld [vmem:[#allocation3 + $0x88] sm:$0xff]
      %v303 = vld [vmem:[#allocation3 + $0x90] sm:$0xff]
      %v304 = vld [vmem:[#allocation3 + $0x98] sm:$0xff]
      %v305 = vld [vmem:[#allocation3 + $0xa0] sm:$0xff]
      %v306 = vld [vmem:[#allocation3 + $0xa8] sm:$0xff]
      %v307 = vld [vmem:[#allocation3 + $0xb0] sm:$0xff]
      %v308 = vld [vmem:[#allocation3 + $0xb8] sm:$0xff]
      %v309 = vld [vmem:[#allocation3 + $0xc0] sm:$0xff]
      %v310 = vld [vmem:[#allocation3 + $0xc8] sm:$0xff]
      %v311 = vld [vmem:[#allocation3 + $0xd0] sm:$0xff]
      %v312 = vld [vmem:[#allocation3 + $0xd8] sm:$0xff]
      %v313 = vld [vmem:[#allocation3 + $0xe0] sm:$0xff]
      %v314 = vld [vmem:[#allocation3 + $0xe8] sm:$0xff]
      %v315 = vld [vmem:[#allocation3 + $0xf0] sm:$0xff]
      %v316 = vld [vmem:[#allocation3 + $0xf8] sm:$0xff]
      %v317 = vmul.f32 %v253, %v285
      %v318 = vmul.f32 %v254, %v286
      %v319 = vmul.f32 %v255, %v287
      %v320 = vmul.f32 %v256, %v288
      %v321 = vmul.f32 %v257, %v289
      %v322 = vmul.f32 %v258, %v290
      %v323 = vmul.f32 %v259, %v291
      %v324 = vmul.f32 %v260, %v292
      %v325 = vmul.f32 %v261, %v293
      %v326 = vmul.f32 %v262, %v294
      %v327 = vmul.f32 %v263, %v295
      %v328 = vmul.f32 %v264, %v296
      %v329 = vmul.f32 %v265, %v297
      %v330 = vmul.f32 %v266, %v298
      %v331 = vmul.f32 %v267, %v299
      %v332 = vmul.f32 %v268, %v300
      %v333 = vmul.f32 %v269, %v301
      %v334 = vmul.f32 %v270, %v302
      %v335 = vmul.f32 %v271, %v303
      %v336 = vmul.f32 %v272, %v304
      %v337 = vmul.f32 %v273, %v305
      %v338 = vmul.f32 %v274, %v306
      %v339 = vmul.f32 %v275, %v307
      %v340 = vmul.f32 %v276, %v308
      %v341 = vmul.f32 %v277, %v309
      %v342 = vmul.f32 %v278, %v310
      %v343 = vmul.f32 %v279, %v311
      %v344 = vmul.f32 %v280, %v312
      %v345 = vmul.f32 %v281, %v313
      %v346 = vmul.f32 %v282, %v314
      %v347 = vmul.f32 %v283, %v315
      %v348 = vmul.f32 %v284, %v316
      %v349 = vld [vmem:[%s4] sm:$0x1]
      %v351 = vlaneseq
      %v352 = vshrl.u32 %v351, 7
      %v353 = vsub.s32 0, %v352
      %v354 = vrot.slane %v349, %v353
      %v356 = vmul.f32 %v317, %v354
      %v357 = vmul.f32 %v318, %v354
      %v358 = vmul.f32 %v319, %v354
      %v359 = vmul.f32 %v320, %v354
      %v360 = vmul.f32 %v321, %v354
      %v361 = vmul.f32 %v322, %v354
      %v362 = vmul.f32 %v323, %v354
      %v363 = vmul.f32 %v324, %v354
      %v364 = vmul.f32 %v325, %v354
      %v365 = vmul.f32 %v326, %v354
      %v366 = vmul.f32 %v327, %v354
      %v367 = vmul.f32 %v328, %v354
      %v368 = vmul.f32 %v329, %v354
      %v369 = vmul.f32 %v330, %v354
      %v370 = vmul.f32 %v331, %v354
      %v371 = vmul.f32 %v332, %v354
      %v372 = vmul.f32 %v333, %v354
      %v373 = vmul.f32 %v334, %v354
      %v374 = vmul.f32 %v335, %v354
      %v375 = vmul.f32 %v336, %v354
      %v376 = vmul.f32 %v337, %v354
      %v377 = vmul.f32 %v338, %v354
      %v378 = vmul.f32 %v339, %v354
      %v379 = vmul.f32 %v340, %v354
      %v380 = vmul.f32 %v341, %v354
      %v381 = vmul.f32 %v342, %v354
      %v382 = vmul.f32 %v343, %v354
      %v383 = vmul.f32 %v344, %v354
      %v384 = vmul.f32 %v345, %v354
      %v385 = vmul.f32 %v346, %v354
      %v386 = vmul.f32 %v347, %v354
      %v387 = vmul.f32 %v348, %v354
      %vm388 = vcmask 261120
      %v389 = vsel %vm388, %v356, 0.0
      %390 = vadd.xlane.f32.xlu0 %v389
      %v391 = vpop.xlane.xlu0 %390
      %v392 = vsel %vm388, %v357, 0.0
      %393 = vadd.xlane.f32.xlu0 %v392
      %v394 = vpop.xlane.xlu0 %393
      %v395 = vsel %vm388, %v358, 0.0
      %396 = vadd.xlane.f32.xlu0 %v395
      %v397 = vpop.xlane.xlu0 %396
      %v398 = vsel %vm388, %v359, 0.0
      %399 = vadd.xlane.f32.xlu0 %v398
      %v400 = vpop.xlane.xlu0 %399
      %v401 = vsel %vm388, %v360, 0.0
      %402 = vadd.xlane.f32.xlu0 %v401
      %v403 = vpop.xlane.xlu0 %402
      %v404 = vsel %vm388, %v361, 0.0
      %405 = vadd.xlane.f32.xlu0 %v404
      %v406 = vpop.xlane.xlu0 %405
      %v407 = vsel %vm388, %v362, 0.0
      %408 = vadd.xlane.f32.xlu0 %v407
      %v409 = vpop.xlane.xlu0 %408
      %v410 = vsel %vm388, %v363, 0.0
      %411 = vadd.xlane.f32.xlu0 %v410
      %v412 = vpop.xlane.xlu0 %411
      %v413 = vsel %vm388, %v364, 0.0
      %414 = vadd.xlane.f32.xlu0 %v413
      %v415 = vpop.xlane.xlu0 %414
      %v416 = vsel %vm388, %v365, 0.0
      %417 = vadd.xlane.f32.xlu0 %v416
      %v418 = vpop.xlane.xlu0 %417
      %v419 = vsel %vm388, %v366, 0.0
      %420 = vadd.xlane.f32.xlu0 %v419
      %v421 = vpop.xlane.xlu0 %420
      %v422 = vsel %vm388, %v367, 0.0
      %423 = vadd.xlane.f32.xlu0 %v422
      %v424 = vpop.xlane.xlu0 %423
      %v425 = vsel %vm388, %v368, 0.0
      %426 = vadd.xlane.f32.xlu0 %v425
      %v427 = vpop.xlane.xlu0 %426
      %v428 = vsel %vm388, %v369, 0.0
      %429 = vadd.xlane.f32.xlu0 %v428
      %v430 = vpop.xlane.xlu0 %429
      %v431 = vsel %vm388, %v370, 0.0
      %432 = vadd.xlane.f32.xlu0 %v431
      %v433 = vpop.xlane.xlu0 %432
      %v434 = vsel %vm388, %v371, 0.0
      %435 = vadd.xlane.f32.xlu0 %v434
      %v436 = vpop.xlane.xlu0 %435
      %v437 = vsel %vm388, %v372, 0.0
      %438 = vadd.xlane.f32.xlu0 %v437
      %v439 = vpop.xlane.xlu0 %438
      %v440 = vsel %vm388, %v373, 0.0
      %441 = vadd.xlane.f32.xlu0 %v440
      %v442 = vpop.xlane.xlu0 %441
      %v443 = vsel %vm388, %v374, 0.0
      %444 = vadd.xlane.f32.xlu0 %v443
      %v445 = vpop.xlane.xlu0 %444
      %v446 = vsel %vm388, %v375, 0.0
      %447 = vadd.xlane.f32.xlu0 %v446
      %v448 = vpop.xlane.xlu0 %447
      %v449 = vsel %vm388, %v376, 0.0
      %450 = vadd.xlane.f32.xlu0 %v449
      %v451 = vpop.xlane.xlu0 %450
      %v452 = vsel %vm388, %v377, 0.0
      %453 = vadd.xlane.f32.xlu0 %v452
      %v454 = vpop.xlane.xlu0 %453
      %v455 = vsel %vm388, %v378, 0.0
      %456 = vadd.xlane.f32.xlu0 %v455
      %v457 = vpop.xlane.xlu0 %456
      %v458 = vsel %vm388, %v379, 0.0
      %459 = vadd.xlane.f32.xlu0 %v458
      %v460 = vpop.xlane.xlu0 %459
      %v461 = vsel %vm388, %v380, 0.0
      %462 = vadd.xlane.f32.xlu0 %v461
      %v463 = vpop.xlane.xlu0 %462
      %v464 = vsel %vm388, %v381, 0.0
      %465 = vadd.xlane.f32.xlu0 %v464
      %v466 = vpop.xlane.xlu0 %465
      %v467 = vsel %vm388, %v382, 0.0
      %468 = vadd.xlane.f32.xlu0 %v467
      %v469 = vpop.xlane.xlu0 %468
      %v470 = vsel %vm388, %v383, 0.0
      %471 = vadd.xlane.f32.xlu0 %v470
      %v472 = vpop.xlane.xlu0 %471
      %v473 = vsel %vm388, %v384, 0.0
      %474 = vadd.xlane.f32.xlu0 %v473
      %v475 = vpop.xlane.xlu0 %474
      %v476 = vsel %vm388, %v385, 0.0
      %477 = vadd.xlane.f32.xlu0 %v476
      %v478 = vpop.xlane.xlu0 %477
      %v479 = vsel %vm388, %v386, 0.0
      %480 = vadd.xlane.f32.xlu0 %v479
      %v481 = vpop.xlane.xlu0 %480
      %v482 = vsel %vm388, %v387, 0.0
      %483 = vadd.xlane.f32.xlu0 %v482
      %v484 = vpop.xlane.xlu0 %483
      %s485 = sld [smem:[#allocation9]]
      %v486 = vstv %s485
      %v487 = vadd.f32 %v391, %v486
      %v488 = vadd.f32 %v394, %v486
      %v489 = vadd.f32 %v397, %v486
      %v490 = vadd.f32 %v400, %v486
      %v491 = vadd.f32 %v403, %v486
      %v492 = vadd.f32 %v406, %v486
      %v493 = vadd.f32 %v409, %v486
      %v494 = vadd.f32 %v412, %v486
      %v495 = vadd.f32 %v415, %v486
      %v496 = vadd.f32 %v418, %v486
      %v497 = vadd.f32 %v421, %v486
      %v498 = vadd.f32 %v424, %v486
      %v499 = vadd.f32 %v427, %v486
      %v500 = vadd.f32 %v430, %v486
      %v501 = vadd.f32 %v433, %v486
      %v502 = vadd.f32 %v436, %v486
      %v503 = vadd.f32 %v439, %v486
      %v504 = vadd.f32 %v442, %v486
      %v505 = vadd.f32 %v445, %v486
      %v506 = vadd.f32 %v448, %v486
      %v507 = vadd.f32 %v451, %v486
      %v508 = vadd.f32 %v454, %v486
      %v509 = vadd.f32 %v457, %v486
      %v510 = vadd.f32 %v460, %v486
      %v511 = vadd.f32 %v463, %v486
      %v512 = vadd.f32 %v466, %v486
      %v513 = vadd.f32 %v469, %v486
      %v514 = vadd.f32 %v472, %v486
      %v515 = vadd.f32 %v475, %v486
      %v516 = vadd.f32 %v478, %v486
      %v517 = vadd.f32 %v481, %v486
      %v518 = vadd.f32 %v484, %v486
      %vm519 = vcmask 7168
      %520 = vst.msk [vmem:[%s138] sm:$0xff] %vm519, %v487
      %521 = vst.msk [vmem:[%s138 + $0x8] sm:$0xff] %vm519, %v488
      %522 = vst.msk [vmem:[%s138 + $0x10] sm:$0xff] %vm519, %v489
      %523 = vst.msk [vmem:[%s138 + $0x18] sm:$0xff] %vm519, %v490
      %524 = vst.msk [vmem:[%s138 + $0x20] sm:$0xff] %vm519, %v491
      %525 = vst.msk [vmem:[%s138 + $0x28] sm:$0xff] %vm519, %v492
      %526 = vst.msk [vmem:[%s138 + $0x30] sm:$0xff] %vm519, %v493
      %527 = vst.msk [vmem:[%s138 + $0x38] sm:$0xff] %vm519, %v494
      %528 = vst.msk [vmem:[%s138 + $0x40] sm:$0xff] %vm519, %v495
      %529 = vst.msk [vmem:[%s138 + $0x48] sm:$0xff] %vm519, %v496
      %530 = vst.msk [vmem:[%s138 + $0x50] sm:$0xff] %vm519, %v497
      %531 = vst.msk [vmem:[%s138 + $0x58] sm:$0xff] %vm519, %v498
      %532 = vst.msk [vmem:[%s138 + $0x60] sm:$0xff] %vm519, %v499
      %533 = vst.msk [vmem:[%s138 + $0x68] sm:$0xff] %vm519, %v500
      %534 = vst.msk [vmem:[%s138 + $0x70] sm:$0xff] %vm519, %v501
      %535 = vst.msk [vmem:[%s138 + $0x78] sm:$0xff] %vm519, %v502
      %536 = vst.msk [vmem:[%s138 + $0x80] sm:$0xff] %vm519, %v503
      %537 = vst.msk [vmem:[%s138 + $0x88] sm:$0xff] %vm519, %v504
      %538 = vst.msk [vmem:[%s138 + $0x90] sm:$0xff] %vm519, %v505
      %539 = vst.msk [vmem:[%s138 + $0x98] sm:$0xff] %vm519, %v506
      %540 = vst.msk [vmem:[%s138 + $0xa0] sm:$0xff] %vm519, %v507
      %541 = vst.msk [vmem:[%s138 + $0xa8] sm:$0xff] %vm519, %v508
      %542 = vst.msk [vmem:[%s138 + $0xb0] sm:$0xff] %vm519, %v509
      %543 = vst.msk [vmem:[%s138 + $0xb8] sm:$0xff] %vm519, %v510
      %544 = vst.msk [vmem:[%s138 + $0xc0] sm:$0xff] %vm519, %v511
      %545 = vst.msk [vmem:[%s138 + $0xc8] sm:$0xff] %vm519, %v512
      %546 = vst.msk [vmem:[%s138 + $0xd0] sm:$0xff] %vm519, %v513
      %547 = vst.msk [vmem:[%s138 + $0xd8] sm:$0xff] %vm519, %v514
      %548 = vst.msk [vmem:[%s138 + $0xe0] sm:$0xff] %vm519, %v515
      %549 = vst.msk [vmem:[%s138 + $0xe8] sm:$0xff] %vm519, %v516
      %550 = vst.msk [vmem:[%s138 + $0xf0] sm:$0xff] %vm519, %v517
      %551 = vst.msk [vmem:[%s138 + $0xf8] sm:$0xff] %vm519, %v518
      %s552 = smul.u32 32, %s28
      %p553 = scmp.lt.s32.totalorder %s552, 127
      %s554 = scalar_select %p553, %s552, 127
      %s555 = smul.addr %s554, 8
      %s556 = scalar_lea.vmem %s6, %s555
      // Predicated region
      $region103: #{gmf_forward.1} parent=27 // pred_check
        %p557 = pneg %p88
      $region104: #{gmf_forward.1} parent=27 // pred_check_branch
        %559 = sbr.rel (%p557) target = $region106
      $region105: #{gmf_forward.1} parent=27 // pred_region
        %s560 = smul.u32 32, %s28
      $region106: #{gmf_forward.1} parent=27 // pred_fallthru
        _
    $region28: #{gmf_forward.1} parent=5 // pred_fallthru
      _
    %p561 = scmp.le.s32.totalorder 2, %s23
    // Predicated region
    $region107: #{gmf_forward.1} parent=5 // pred_check
      %p562 = pneg %p561
    $region108: #{gmf_forward.1} parent=5 // pred_check_branch
      %564 = sbr.rel (%p562) target = $region110
    $region109: #{gmf_forward.1} parent=5 // pred_region
      %s565 = ssub.s32 %s23, 2
      // Predicated region
      $region111: #{gmf_forward.1} parent=109 // pred_check
        %p566 = pneg %p94
      $region112: #{gmf_forward.1} parent=109 // pred_check_branch
        %568 = sbr.rel (%p566) target = $region114
      $region113: #{gmf_forward.1} parent=109 // pred_region
        %s569 = smul.u32 32, %s29
        %p570 = scmp.lt.s32.totalorder %s569, 127
        %s571 = scalar_select %p570, %s569, 127
        %s572 = smul.addr %s571, 8
        %s573 = scalar_lea.vmem %s6, %s572
      $region114: #{gmf_forward.1} parent=109 // pred_fallthru
        _
    $region110: #{gmf_forward.1} parent=5 // pred_fallthru
      _
  $region6: #{gmf_forward.1} parent=0 // loop_footer
    %s27 = sadd.s32 1, %s23
  $region7: #{gmf_forward.1} parent=0 // loop_footer_branch
    %22 = sbr.rel target = $region3
  $region8: #{gmf_forward.1} parent=0 // loop_exit
    _
  %574 = vsyncmov [#allocation4]
  %s575 = vpop.sfrf %574
  %p576 = scmp.eq.s32.totalorder %s575, 0
  %p577 = pneg %p576
  %579 = shalt.err (%p577)
  %580 = vsyncmov [#allocation5]
  %s581 = vpop.sfrf %580
  %p582 = scmp.eq.s32.totalorder %s581, 0
  %p583 = pneg %p582
  %585 = shalt.err (%p583)

</llo_original>
